<compile_context>
chip_gen: v7x
topology: tpu7x:2x2x1
jax: 0.10.0
libtpu: 0.0.40
codegen_flags: <defaults>
</compile_context>

<pallas_src>
import jax
import jax.numpy as jnp
from jax.experimental import pallas as pl
from jax.experimental.pallas import tpu as pltpu


def _round_up(x, m):
    return ((x + m - 1) // m) * m


def _equi_fc_relu_kernel(x_ref, w_ref, b_ref, o_ref):
    # x_ref: (tile_n, C_in)   VMEM activation tile
    # w_ref: (C_in, C_out)    VMEM, resident across the grid (constant index_map)
    # b_ref: (1, C_out)       VMEM, f32
    # o_ref: (tile_n, C_out)  VMEM, input dtype
    y = jnp.dot(x_ref[...], w_ref[...], preferred_element_type=jnp.float32)
    y = y + b_ref[...]
    o_ref[...] = jnp.maximum(y, 0.0).astype(o_ref.dtype)


def equi_feature_extractor(inputs, weight, bias, *, max_tile_n=4096,
                           compute_dtype=None, allow_xla_fast_path=True):
    """Pallas implementation of EquiFeatureExtractor.forward.

    inputs: (dim_0, dim_1, C_in)
    weight: (C_in, C_out)   (1x1-conv kernel, spatial dims squeezed)
    bias:   (C_out,)
    compute_dtype: optional matmul-input dtype (e.g. jnp.bfloat16). Only
        worthwhile if `inputs` are already in that dtype (or the cast fuses
        upstream); a standalone f32->bf16 cast adds HBM traffic. Accumulation
        and the bias+relu epilogue stay f32; changes numerics vs. f32 module.
    returns (dim_0, dim_1, C_out) with inputs.dtype
    """
    c_in, c_out = weight.shape
    if c_out == 0:
        # Mirrors the module's `output_size == 0` branch (ptu.zeros(0)).
        return jnp.zeros((0,), dtype=inputs.dtype)

    dim_0, dim_1 = inputs.shape[0], inputs.shape[1]
    n = dim_0 * dim_1
    out_dtype = inputs.dtype

    x = inputs.reshape(n, c_in)
    if compute_dtype is not None:
        x = x.astype(compute_dtype)
    w = weight.astype(x.dtype)                  # tiny; one dtype into the MXU
    b2d = bias.reshape(1, c_out).astype(jnp.float32)

    # ---- Tiny-problem fast path: XLA fuses matmul+bias+relu fine at the
    # module's intended shapes (e.g. 16x32) and avoids pallas_call dispatch.
    if allow_xla_fast_path and n * (c_in + c_out) <= 16384:
        y = jnp.maximum(jnp.dot(x, w, preferred_element_type=jnp.float32) + b2d, 0.0)
        return y.astype(out_dtype).reshape(dim_0, dim_1, c_out)

    # ---- Row-tile size from a conservative VMEM budget (v7x: 64 MiB physical
    # VMEM per TC).  Count the (8,128) layout padding the compiler applies to
    # narrow channel dims, and double-buffering of the streamed x / out tiles.
    x_it = jnp.dtype(x.dtype).itemsize
    o_it = jnp.dtype(out_dtype).itemsize
    w_it = jnp.dtype(w.dtype).itemsize
    c_in_lay = _round_up(c_in, 128)
    c_out_lay = _round_up(c_out, 128)
    bytes_per_row = 2 * (c_in_lay * x_it + c_out_lay * o_it)          # 2x-buffered
    w_resident = 2 * (c_in_lay * c_out_lay * w_it + c_out_lay * 4)    # W + bias
    # NOTE: W/b have a constant index_map so they are revisited, not re-fetched;
    # we still budget 2 buffers for them to be safe (pl.Buffered(1) not relied on).
    tile_budget = 24 << 20
    avail = max(tile_budget - w_resident, 1 << 20)
    tile_cap = max(8, (avail // bytes_per_row) // 8 * 8)
    tile_n = min(max(8, (max_tile_n // 8) * 8), tile_cap)

    if n > tile_n:
        # Ragged last block is handled by Pallas masking; undefined tail rows
        # are never stored (each output row depends only on its own input row).
        grid_n = pl.cdiv(n, tile_n)
    elif n >= 1024:
        # Medium N that fits one tile: split into 2 blocks so the "parallel"
        # grid axis can shard across both TensorCores on v7x.
        tile_n = _round_up(-(-n // 2), 8)
        grid_n = pl.cdiv(n, tile_n)
    else:
        tile_n = n                      # single block, no pipeline machinery
        grid_n = 1

    bufs = 2 if grid_n > 1 else 1
    vmem_bytes = bufs * tile_n * (c_in_lay * x_it + c_out_lay * o_it) + w_resident
    vmem_limit = int(min(max(2 * vmem_bytes, 4 << 20), 48 << 20))

    out_flat = pl.pallas_call(
        _equi_fc_relu_kernel,
        out_shape=jax.ShapeDtypeStruct((n, c_out), out_dtype),
        grid_spec=pltpu.PrefetchScalarGridSpec(
            num_scalar_prefetch=0,
            grid=(grid_n,),
            in_specs=[
                pl.BlockSpec((tile_n, c_in), lambda i: (i, 0)),    # activations
                pl.BlockSpec((c_in, c_out), lambda i: (0, 0)),     # resident weight
                pl.BlockSpec((1, c_out), lambda i: (0, 0)),        # resident bias
            ],
            out_specs=pl.BlockSpec((tile_n, c_out), lambda i: (i, 0)),
        ),
        compiler_params=pltpu.CompilerParams(
            dimension_semantics=("parallel",),
            vmem_limit_bytes=vmem_limit,
        ),
    )(x, w, b2d)

    return out_flat.reshape(dim_0, dim_1, c_out)


def _reference(inputs, weight, bias):
    dim_0, dim_1, c_in = inputs.shape
    x = inputs.reshape(dim_0 * dim_1, c_in)
    y = jnp.maximum(x @ weight + bias[None, :], 0.0)
    return y.reshape(dim_0, dim_1, weight.shape[1])


if __name__ == "__main__":
    key = jax.random.PRNGKey(0)
    k_x, k_w, k_b, k_x2 = jax.random.split(key, 4)

    # Small shapes consistent with the module: a (batch, seq, feat) vector obs.
    dim_0, dim_1 = 2, 8          # e.g. (episode, timestep)
    c_in, c_out = 32, 32         # in_type.size, out_type.size

    x = jax.random.normal(k_x, (dim_0, dim_1, c_in), dtype=jnp.float32)
    # Deterministic synthetic parameters (stand-in for R2Conv's expanded weights).
    w = jax.random.normal(k_w, (c_in, c_out), dtype=jnp.float32) * 0.1
    b = jax.random.normal(k_b, (c_out,), dtype=jnp.float32) * 0.1
    ref = _reference(x, w, b)

    # 1) Tiny case through the XLA fast path (the intended production shape).
    out = jax.block_until_ready(equi_feature_extractor(x, w, b))
    assert out.shape == (dim_0, dim_1, c_out), out.shape
    assert jnp.allclose(out, ref, atol=1e-5, rtol=1e-5), "mismatch (fast path)"

    # 2) Same tiny case forced through the single-block Pallas path.
    out_p = jax.block_until_ready(
        equi_feature_extractor(x, w, b, allow_xla_fast_path=False))
    assert jnp.allclose(out_p, ref, atol=1e-5, rtol=1e-5), "mismatch (single block)"

    # 3) Medium N: default tiling splits into 2 blocks (megacore-friendly grid).
    d0b, d1b = 4, 300            # N = 1200
    x2 = jax.random.normal(k_x2, (d0b, d1b, c_in), dtype=jnp.float32)
    ref2 = _reference(x2, w, b)
    out2 = jax.block_until_ready(
        equi_feature_extractor(x2, w, b, allow_xla_fast_path=False))
    assert out2.shape == (d0b, d1b, c_out), out2.shape
    assert jnp.allclose(out2, ref2, atol=1e-5, rtol=1e-5), "mismatch (split-2)"

    # 4) Same data with a small tile cap: exercises the ragged last block path
    #    (grid = cdiv(1200, 256) = 5, tail block of 176 rows).
    out3 = jax.block_until_ready(
        equi_feature_extractor(x2, w, b, allow_xla_fast_path=False, max_tile_n=256))
    assert jnp.allclose(out3, ref2, atol=1e-5, rtol=1e-5), "mismatch (ragged)"

    print("KERNEL_OK")
</pallas_src>

<mosaic_0001>
module attributes {stable_mosaic.version = 11 : i64} {
  func.func @_equi_fc_relu_kernel(%arg0: i32, %arg1: memref<16x32xf32, #tpu.memory_space<vmem>>, %arg2: memref<32x32xf32, #tpu.memory_space<vmem>>, %arg3: memref<1x32xf32, #tpu.memory_space<vmem>>, %arg4: memref<16x32xf32, #tpu.memory_space<vmem>>) attributes {dimension_semantics = [#tpu.dimension_semantics<parallel>], iteration_bounds = array<i64: 1>, scalar_prefetch = 0 : i64, scratch_operands = 0 : i64, tpu.core_type = #tpu.core_type<tc>, window_params = [{transform_indices = @transform_0, window_bounds = array<i64: 16, 32>}, {pipeline_mode = #tpu.pipeline_mode<synchronous>, transform_indices = @transform_1, window_bounds = array<i64: 32, 32>}, {pipeline_mode = #tpu.pipeline_mode<synchronous>, transform_indices = @transform_2, window_bounds = array<i64: 1, 32>}, {transform_indices = @transform_3, window_bounds = array<i64: 16, 32>}]} {
    %c0 = arith.constant 0 : index
    %c0_0 = arith.constant 0 : index
    %0 = vector.load %arg1[%c0, %c0_0] : memref<16x32xf32, #tpu.memory_space<vmem>>, vector<16x32xf32>
    %c0_1 = arith.constant 0 : index
    %c0_2 = arith.constant 0 : index
    %1 = vector.load %arg2[%c0_1, %c0_2] : memref<32x32xf32, #tpu.memory_space<vmem>>, vector<32x32xf32>
    %cst = arith.constant dense<0.000000e+00> : vector<16x32xf32>
    %2 = tpu.matmul %0, %1, %cst {dimension_numbers = #tpu.dot_dimension_numbers<[1], [0], [0], [1], [0, 0, 1, 1], [], []>} : vector<16x32xf32>, vector<32x32xf32>, vector<16x32xf32> -> vector<16x32xf32>
    %c0_3 = arith.constant 0 : index
    %c0_4 = arith.constant 0 : index
    %3 = vector.load %arg3[%c0_3, %c0_4] : memref<1x32xf32, #tpu.memory_space<vmem>>, vector<1x32xf32>
    %4 = vector.broadcast %3 : vector<1x32xf32> to vector<16x32xf32>
    %5 = arith.addf %2, %4 : vector<16x32xf32>
    %cst_5 = arith.constant 0.000000e+00 : f32
    %6 = vector.broadcast %cst_5 : f32 to vector<16x32xf32>
    %7 = arith.maximumf %5, %6 : vector<16x32xf32>
    %c0_6 = arith.constant 0 : index
    %c0_7 = arith.constant 0 : index
    %8 = vector.load %arg4[%c0_6, %c0_7] : memref<16x32xf32, #tpu.memory_space<vmem>>, vector<16x32xf32>
    tpu.vector_store %arg4[%c0_6, %c0_7], %7 {strides = array<i32>} : memref<16x32xf32, #tpu.memory_space<vmem>>, vector<16x32xf32>,
    return
  }
  func.func @transform_0(%arg0: i32) -> (i32, i32) {
    %c0_i32 = arith.constant 0 : i32
    %c0_i32_0 = arith.constant 0 : i32
    return %arg0, %c0_i32 : i32, i32
  }
  func.func @transform_1(%arg0: i32) -> (i32, i32) {
    %c0_i32 = arith.constant 0 : i32
    %c0_i32_0 = arith.constant 0 : i32
    %c0_i32_1 = arith.constant 0 : i32
    return %c0_i32, %c0_i32_0 : i32, i32
  }
  func.func @transform_2(%arg0: i32) -> (i32, i32) {
    %c0_i32 = arith.constant 0 : i32
    %c0_i32_0 = arith.constant 0 : i32
    %c0_i32_1 = arith.constant 0 : i32
    return %c0_i32, %c0_i32_0 : i32, i32
  }
  func.func @transform_3(%arg0: i32) -> (i32, i32) {
    %c0_i32 = arith.constant 0 : i32
    %c0_i32_0 = arith.constant 0 : i32
    return %arg0, %c0_i32 : i32, i32
  }
}

</mosaic_0001>

<llo_original>
// kernel: tpu_custom_call.1
$region0: #{tpu_custom_call.1}
  #allocation0 [shape = 'u32[]', space=smem, size = 0x4, offset = 0x4, fixed_abs, tag = 'smem constant byte address 0x4 - core index']
  #allocation1 [shape = 'u32[144,128]{1,0:T(1,128)}', space=vmem, size = 0x12000, scoped, tag = 'internal scratch']
  %s0 = inlined_call_operand.hbm [shape: f32[16,32], index: 0, kind: input, shape index: {}]
  %s1 = inlined_call_operand.hbm [shape: f32[32,32], index: 1, kind: input, shape index: {}]
  %s2 = inlined_call_operand.vmem [shape: f32[1,32], index: 2, kind: input, shape index: {}]
  %s3 = inlined_call_operand.hbm [shape: f32[16,32], index: 3, kind: output, shape index: {}]
  %s4 = sld [smem:[#allocation0]]
  $region30: #{tpu_custom_call.1} parent=0
    _
  %s6 = ssub.s32 1, %s4
  %s7 = scalar_select 0, %s6, %s4
  $region1: #{tpu_custom_call.1} parent=0
    #allocation2 [shape = 'u8[8192]{0}', space=vmem, size = 0x2000, scoped, tag = 'input window, operand 0, single buffered']
    #allocation3 [shape = 's32[1]{0}', space=sflag, size = 0x4, scoped, tag = 'scoped memory for tpu_custom_call.1']
    #allocation4 [shape = 's32[1]{0}', space=sflag, size = 0x4, scoped, tag = 'scoped memory for tpu_custom_call.1']
    #allocation5 [shape = 'u8[16384]{0}', space=vmem, size = 0x4000, scoped, tag = 'input window, operand 1, single buffered']
    #allocation6 [shape = 's32[1]{0}', space=sflag, size = 0x4, scoped, tag = 'scoped memory for tpu_custom_call.1']
    #allocation7 [shape = 'u8[8192]{0}', space=vmem, size = 0x2000, scoped, tag = 'output window, operand 0, single buffered']
    %8 = vsyncpa [#allocation3], 0
    %9 = vsyncpa [#allocation6], 0
    %10 = vsyncpa [#allocation4], 0
    // Predicated region
    $region2: #{tpu_custom_call.1} parent=1 // pred_check
      _
    $region3: #{tpu_custom_call.1} parent=1 // pred_check_branch
      %12 = sbr.rel (0) target = $region5
    $region4: #{tpu_custom_call.1} parent=1 // pred_region
      %s14 = ssub.s32 256, 256
      %15 = vsyncadd [#allocation3], %s14
      %s16 = sshll.u32 [#allocation2], 4
      %s17 = int_to_ptr.vmem [resolvable:$true] %s16
      %22 = dma.hbm_to_vmem [thread:$0]  %s0, 256, %s17, [#allocation3], 128, 128, 8
    $region5: #{tpu_custom_call.1} parent=1 // pred_fallthru
      _
    // Predicated region
    $region6: #{tpu_custom_call.1} parent=1 // pred_check
      _
    $region7: #{tpu_custom_call.1} parent=1 // pred_check_branch
      %24 = sbr.rel (0) target = $region9
    $region8: #{tpu_custom_call.1} parent=1 // pred_region
      %s26 = ssub.s32 512, 512
      %27 = vsyncadd [#allocation6], %s26
      %s28 = sshll.u32 [#allocation5], 4
      %s29 = int_to_ptr.vmem [resolvable:$true] %s28
      %34 = dma.hbm_to_vmem [thread:$0]  %s1, 512, %s29, [#allocation6], 128, 128, 8
    $region9: #{tpu_custom_call.1} parent=1 // pred_fallthru
      _
    // Predicated region
    $region10: #{tpu_custom_call.1} parent=1 // pred_check
      _
    $region11: #{tpu_custom_call.1} parent=1 // pred_check_branch
      %36 = sbr.rel (0) target = $region13
    $region12: #{tpu_custom_call.1} parent=1 // pred_region
      _
    $region13: #{tpu_custom_call.1} parent=1 // pred_fallthru
      _
    // Predicated region
    $region14: #{tpu_custom_call.1} parent=1 // pred_check
      _
    $region15: #{tpu_custom_call.1} parent=1 // pred_check_branch
      %38 = sbr.rel (0) target = $region17
    $region16: #{tpu_custom_call.1} parent=1 // pred_region
      %39 = dma.done [#allocation3], 256
    $region17: #{tpu_custom_call.1} parent=1 // pred_fallthru
      _
    // Predicated region
    $region18: #{tpu_custom_call.1} parent=1 // pred_check
      _
    $region19: #{tpu_custom_call.1} parent=1 // pred_check_branch
      %41 = sbr.rel (0) target = $region21
    $region20: #{tpu_custom_call.1} parent=1 // pred_region
      %42 = dma.done [#allocation6], 512
    $region21: #{tpu_custom_call.1} parent=1 // pred_fallthru
      _
    %v43 = vld [vmem:[#allocation2] sm:$0xff]
    %v44 = vld [vmem:[#allocation2 + $0x8] sm:$0xff]
    %v45 = vld [vmem:[#allocation5] sm:$0xff]
    %v46 = vld [vmem:[#allocation5 + $0x8] sm:$0xff]
    %v47 = vld [vmem:[#allocation5 + $0x10] sm:$0xff]
    %v48 = vld [vmem:[#allocation5 + $0x18] sm:$0xff]
    %v49 = vld [vmem:[%s2] sm:$0x1]
    %v51 = vlaneseq
    %v52 = vshrl.u32 %v51, 7
    %v53 = vsub.s32 0, %v52
    %v54 = vrot.slane %v49, %v53
    %vm56 = vcmask 261120
    %v58 = vsel %vm56, %v43, 0
    %v61 = vsel %vm56, %v44, 0
    %63 = vmatprep.subr.mxu0 0.0
    %64 = vmatpush1.msra.mxu0 %v45
    %65 = vmatprep.subr.mxu0 0.0
    %66 = vmatpush1.msra.mxu0 %v46
    %67 = vmatprep.subr.mxu0 0.0
    %68 = vmatpush1.msra.mxu0 %v47
    %69 = vmatprep.subr.mxu0 0.0
    %70 = vmatpush1.msra.mxu0 %v48
    %71 = vmatprep.subr.mxu0 0.0
    %72 = vmatpush1.msra.mxu0 0.0
    %73 = vmatprep.subr.mxu0 0.0
    %74 = vmatpush1.msra.mxu0 0.0
    %75 = vmatprep.subr.mxu0 0.0
    %76 = vmatpush1.msra.mxu0 0.0
    %77 = vmatprep.subr.mxu0 0.0
    %78 = vmatpush1.msra.mxu0 0.0
    %79 = vmatprep.subr.mxu0 0.0
    %80 = vmatpush1.msra.mxu0 0.0
    %81 = vmatprep.subr.mxu0 0.0
    %82 = vmatpush1.msra.mxu0 0.0
    %83 = vmatprep.subr.mxu0 0.0
    %84 = vmatpush1.msra.mxu0 0.0
    %85 = vmatprep.subr.mxu0 0.0
    %86 = vmatpush1.msra.mxu0 0.0
    %87 = vmatprep.subr.mxu0 0.0
    %88 = vmatpush1.msra.mxu0 0.0
    %89 = vmatprep.subr.mxu0 0.0
    %90 = vmatpush1.msra.mxu0 0.0
    %91 = vmatprep.subr.mxu0 0.0
    %92 = vmatpush1.msra.mxu0 0.0
    %93 = vmatprep.subr.mxu0 0.0
    %94 = vmatpush1.msra.mxu0 0.0
    %95 = vmatprep.subr.mxu0 0.0
    %96 = vmatpush1.msra.mxu0 0.0
    %97 = vmatprep.subr.mxu0 0.0
    %98 = vmatpush1.msra.mxu0 0.0
    %99 = vmatprep.subr.mxu0 0.0
    %100 = vmatpush1.msra.mxu0 0.0
    %101 = vmatprep.subr.mxu0 0.0
    %102 = vmatpush1.msra.mxu0 0.0
    %103 = vmatprep.subr.mxu0 0.0
    %104 = vmatpush1.msra.mxu0 0.0
    %105 = vmatprep.subr.mxu0 0.0
    %106 = vmatpush1.msra.mxu0 0.0
    %107 = vmatprep.subr.mxu0 0.0
    %108 = vmatpush1.msra.mxu0 0.0
    %109 = vmatprep.subr.mxu0 0.0
    %110 = vmatpush1.msra.mxu0 0.0
    %111 = vmatprep.subr.mxu0 0.0
    %112 = vmatpush1.msra.mxu0 0.0
    %113 = vmatprep.subr.mxu0 0.0
    %114 = vmatpush1.msra.mxu0 0.0
    %115 = vmatprep.subr.mxu0 0.0
    %116 = vmatpush1.msra.mxu0 0.0
    %117 = vmatprep.subr.mxu0 0.0
    %118 = vmatpush1.msra.mxu0 0.0
    %119 = vmatprep.subr.mxu0 0.0
    %120 = vmatpush1.msra.mxu0 0.0
    %121 = vmatprep.subr.mxu0 0.0
    %122 = vmatpush1.msra.mxu0 0.0
    %123 = vmatprep.subr.mxu0 0.0
    %124 = vmatpush1.msra.mxu0 0.0
    %125 = vmatprep.subr.mxu0 0.0
    %126 = vmatpush1.msra.mxu0 0.0
    %127 = vmatprep.mubr.f32.mxu0 0.0
    %128 = vmatmul.mubr.f32.gmra.mrb[0].mxu0 %v58
    %v129 = vpop.f32.mrb[0].mxu0
    %v130 = vadd.f32 %v54, %v129
    %v131 = vpop.f32.mrb[0].mxu0
    %132 = vmatprep.mubr.f32.mxu0 0.0
    %133 = vmatmul.mubr.f32.gmra.mrb[0].mxu0 %v61
    %v134 = vpop.f32.mrb[0].mxu0
    %v135 = vadd.f32 %v54, %v134
    %v136 = vpop.f32.mrb[0].mxu0
    %137 = vdwg.mxu0
    %v138 = vmax.f32 %v130, 0.0
    %v139 = vmax.f32 %v135, 0.0
    %140 = vst.msk [vmem:[#allocation7] sm:$0xff] %vm56, %v138
    %141 = vst.msk [vmem:[#allocation7 + $0x8] sm:$0xff] %vm56, %v139
    // Predicated region
    $region22: #{tpu_custom_call.1} parent=1 // pred_check
      _
    $region23: #{tpu_custom_call.1} parent=1 // pred_check_branch
      %143 = sbr.rel (0) target = $region25
    $region24: #{tpu_custom_call.1} parent=1 // pred_region
      %s145 = ssub.s32 256, 256
      %146 = vsyncadd [#allocation4], %s145
      %s147 = sshll.u32 [#allocation7], 4
      %s148 = int_to_ptr.vmem [resolvable:$true] %s147
      %153 = dma.vmem_to_hbm [thread:$0]  %s148, 256, %s3, [#allocation4], 128, 128, 8
    $region25: #{tpu_custom_call.1} parent=1 // pred_fallthru
      _
    // Predicated region
    $region26: #{tpu_custom_call.1} parent=1 // pred_check
      _
    $region27: #{tpu_custom_call.1} parent=1 // pred_check_branch
      %155 = sbr.rel (0) target = $region29
    $region28: #{tpu_custom_call.1} parent=1 // pred_region
      %156 = dma.done [#allocation4], 256
    $region29: #{tpu_custom_call.1} parent=1 // pred_fallthru
      _
    %157 = vsyncpa [#allocation3], 1
    %158 = vsyncpa [#allocation6], 1
    %159 = vsyncpa [#allocation4], 1

</llo_original>
